<compile_context>
chip_gen: v6e
topology: v6e:2x2x1
jax: 0.10.0
libtpu: 0.0.40
codegen_flags: <defaults>
</compile_context>

<pallas_src>
import functools

import jax
import jax.numpy as jnp
from jax import lax
from jax.experimental import pallas as pl
from jax.experimental.pallas import tpu as pltpu


# --------------------------------- kernel ----------------------------------
def cdil_block_kernel(x_ref, w1_ref, b1_ref, w2_ref, b2_ref, *rest,
                      ks, dil, seq_len, has_res):
    """One batch tile: x_ref (TB, L, C_in) -> o_ref (TB, L, C_out)."""
    if has_res:
        wres_ref, bres_ref, o_ref = rest
    else:
        (o_ref,) = rest

    L = seq_len
    lp = (dil * (ks - 1)) // 2                        # torch 'same' left pad (circular)
    shifts = [(lp - k * dil) % L for k in range(ks)]  # jnp.roll-style shift per tap

    def stack_taps(a):
        # (TB, L, C) -> (TB, L, ks*C) bf16: whole-slab rolls along L (XLU),
        # per-piece bf16 cast BEFORE the lane concat, one concat per layer.
        pieces = [(a if s == 0 else pltpu.roll(a, s, axis=1)).astype(jnp.bfloat16)
                  for s in shifts]
        return pieces[0] if len(pieces) == 1 else jnp.concatenate(pieces, axis=-1)

    dn = (((2,), (0,)), ((), ()))                     # contract lanes vs. weight rows

    x = x_ref[...]                                                    # (TB, L, C_in)

    # conv1 (BN1 scale folded into w1) -> +shift -> ReLU; dropout == identity (eval)
    h = lax.dot_general(stack_taps(x), w1_ref[...], dn,
                        preferred_element_type=jnp.float32)           # (TB, L, hdim)
    h = jnp.maximum(h + b1_ref[...], 0.0)

    # conv2 (BN2 scale folded into w2) -> +shift -> ReLU
    y = lax.dot_general(stack_taps(h), w2_ref[...], dn,
                        preferred_element_type=jnp.float32)           # (TB, L, C_out)
    y = jnp.maximum(y + b2_ref[...], 0.0)

    # residual branch; final relu(y) is redundant (y >= 0 already), just add.
    if has_res:
        res = lax.dot_general(x.astype(jnp.bfloat16), wres_ref[...], dn,
                              preferred_element_type=jnp.float32) + bres_ref[...]
    else:
        res = x.astype(jnp.float32)                   # identity residual, f32 add
    o_ref[...] = (y + res).astype(o_ref.dtype)


# ------------------------------ host-side prep ------------------------------
def _prepare_params(w1, w2, wres, bres, bn1, bn2, *, ks, eps=1e-5):
    """Torch-layout weights -> MXU-ready tap-stacked bf16 weights + f32 BN shifts."""
    hdim, cin = w1.shape[0], w1.shape[1]
    cout = w2.shape[0]

    def fold(bn):
        g, b, m, v = bn
        s = (g / jnp.sqrt(v + eps)).astype(jnp.float32)
        return s, (b - m * s).astype(jnp.float32)

    s1, b1 = fold(bn1)
    s2, b2 = fold(bn2)
    # (C_out, C_in, ks) -> (ks, C_in, C_out); fold BN scale over C_out; stack the
    # taps along the contraction axis so each conv layer is a single matmul.
    w1k = jnp.transpose(w1, (2, 1, 0)).astype(jnp.float32) * s1[None, None, :]
    w2k = jnp.transpose(w2, (2, 1, 0)).astype(jnp.float32) * s2[None, None, :]
    w1s = w1k.reshape(ks * cin, hdim).astype(jnp.bfloat16)
    w2s = w2k.reshape(ks * hdim, cout).astype(jnp.bfloat16)

    if wres is None:                                   # identity residual (c_in == c_out)
        resp = None
    else:
        wres_m = jnp.transpose(wres, (1, 0)).astype(jnp.bfloat16)    # (C_in, C_out)
        if bres is None:
            bres = jnp.zeros((cout,), jnp.float32)
        resp = (wres_m, bres.reshape(1, cout).astype(jnp.float32))
    return w1s, b1.reshape(1, hdim), w2s, b2.reshape(1, cout), resp


def _vmem_budget_bytes():
    """~75% of physical VMEM: ~96 MiB on v5e/v6e (128 MiB), ~48 MiB on v7x (64 MiB)."""
    try:
        cap = int(pltpu.get_tpu_info().vmem_capacity_bytes)
    except Exception:
        cap = 64 * 1024 * 1024                         # conservative (v7x-sized) fallback
    return min((cap * 3) // 4, 96 * 1024 * 1024)


def _pick_batch_tile(B, L, step_bytes_fn, vmem_budget, target_rows=8192):
    """Largest divisor TB of B such that the per-step working set fits the VMEM
    budget, TB*L stays near the ~4-8K-row sweet spot, and (when B > 1) the grid
    keeps >= 2 steps so both v7x TensorCores get work."""
    best = 1
    for tb in range(1, B + 1):
        if B % tb:
            continue
        if B > 1 and B // tb < 2:                      # >= 2 grid steps (v7x megacore)
            continue
        if tb > 1 and (tb * L > target_rows or step_bytes_fn(tb) > vmem_budget):
            continue
        best = tb
    return best


def cdil_block(x, w1, w2, wres, bres, bn1, bn2, *, ks, dil, eps=1e-5):
    """x: (B, L, C_in) channels-last (f32 or bf16).  w1: (hdim, C_in, ks),
    w2: (C_out, hdim, ks) in torch Conv1d layout.  wres: (C_out, C_in) or None
    (identity residual when C_in == C_out), bres: (C_out,) or None.
    bn = (gamma, beta, running_mean, running_var).  Returns (B, L, C_out)."""
    B, L, cin = x.shape
    hdim, cout = w1.shape[0], w2.shape[0]
    has_res = wres is not None
    if not has_res:
        assert cin == cout, "identity residual requires c_in == c_out"

    w1s, b1, w2s, b2, resp = _prepare_params(w1, w2, wres, bres, bn1, bn2,
                                             ks=ks, eps=eps)

    act_bytes = jnp.dtype(x.dtype).itemsize
    budget = _vmem_budget_bytes()

    def step_bytes(tb):                                # rough per-grid-step VMEM estimate
        rows = tb * L
        io = 2 * rows * (cin + cout) * act_bytes       # double-buffered x / out blocks
        tmp = rows * (ks * cin * 2 + hdim * 4 + ks * hdim * 2 + 2 * cout * 4)
        wts = 2 * (ks * cin * hdim + ks * hdim * cout + cin * cout) * 2
        return io + tmp + wts

    TB = _pick_batch_tile(B, L, step_bytes, budget)

    kernel = functools.partial(cdil_block_kernel, ks=ks, dil=dil, seq_len=L,
                               has_res=has_res)
    in_specs = [
        pl.BlockSpec((TB, L, cin), lambda b: (b, 0, 0)),      # x slab (3-D batch tile)
        pl.BlockSpec((ks * cin, hdim), lambda b: (0, 0)),     # conv1 (tap-stacked, BN-folded)
        pl.BlockSpec((1, hdim), lambda b: (0, 0)),            # bn1 shift
        pl.BlockSpec((ks * hdim, cout), lambda b: (0, 0)),    # conv2 (tap-stacked, BN-folded)
        pl.BlockSpec((1, cout), lambda b: (0, 0)),            # bn2 shift
    ]
    args = [x, w1s, b1, w2s, b2]
    if has_res:
        wres_m, bres2 = resp
        in_specs += [pl.BlockSpec((cin, cout), lambda b: (0, 0)),   # residual 1x1 weight
                     pl.BlockSpec((1, cout), lambda b: (0, 0))]     # residual bias
        args += [wres_m, bres2]

    out = pl.pallas_call(
        kernel,
        out_shape=jax.ShapeDtypeStruct((B, L, cout), x.dtype),
        grid_spec=pltpu.PrefetchScalarGridSpec(
            num_scalar_prefetch=0,
            grid=(B // TB,),
            in_specs=in_specs,
            out_specs=pl.BlockSpec((TB, L, cout), lambda b: (b, 0, 0)),
        ),
        compiler_params=pltpu.CompilerParams(
            dimension_semantics=("parallel",),
            vmem_limit_bytes=budget,
        ),
    )(*args)
    return out


# --------------------------- pure-JAX references ----------------------------
def cdil_block_ref_matched(x, params, *, ks, dil):
    """Same folded-BN / bf16-matmul recipe as the kernel, in plain JAX (tight check)."""
    w1s, b1, w2s, b2, resp = params
    B, L, cin = x.shape
    lp = (dil * (ks - 1)) // 2
    dn = (((2,), (0,)), ((), ()))

    def stack(a):  # (B, L, C) -> (B, L, ks*C) bf16
        return jnp.concatenate(
            [jnp.roll(a, lp - k * dil, axis=1).astype(jnp.bfloat16) for k in range(ks)],
            axis=-1)

    h = lax.dot_general(stack(x), w1s, dn, preferred_element_type=jnp.float32)
    h = jnp.maximum(h + b1, 0.0)
    y = lax.dot_general(stack(h), w2s, dn, preferred_element_type=jnp.float32)
    y = jnp.maximum(y + b2, 0.0)
    if resp is None:
        res = x.astype(jnp.float32)
    else:
        wres_m, bres2 = resp
        res = lax.dot_general(x.astype(jnp.bfloat16), wres_m, dn,
                              preferred_element_type=jnp.float32) + bres2
    return y + res


def cdil_block_ref_f32(x, w1, w2, wres, bres, bn1, bn2, *, ks, dil, eps=1e-5):
    """Full-f32 eval-mode reference of the PyTorch math (loose drift check)."""
    lp = (dil * (ks - 1)) // 2
    w1k = jnp.transpose(w1, (2, 1, 0))
    w2k = jnp.transpose(w2, (2, 1, 0))

    def conv_circ(a, wk):
        out = 0.0
        for k in range(wk.shape[0]):
            out = out + jnp.roll(a, lp - k * dil, axis=1) @ wk[k]
        return out

    def bn(h, p):
        g, b, m, v = p
        return (h - m) / jnp.sqrt(v + eps) * g + b

    h = jnp.maximum(bn(conv_circ(x, w1k), bn1), 0.0)
    y = jnp.maximum(bn(conv_circ(h, w2k), bn2), 0.0)
    res = x if wres is None else x @ wres.T + bres
    return jnp.maximum(y, 0.0) + res


def _make_bn(keys, c):
    return (jax.random.uniform(keys[0], (c,), jnp.float32, 0.5, 1.5),   # gamma
            jax.random.normal(keys[1], (c,), jnp.float32) * 0.1,         # beta
            jax.random.normal(keys[2], (c,), jnp.float32) * 0.1,         # running mean
            jax.random.uniform(keys[3], (c,), jnp.float32, 0.5, 1.5))    # running var


# ----------------------------------- main ------------------------------------
if __name__ == "__main__":
    key = jax.random.PRNGKey(0)

    # --- test 1: CDILBlock(c_in=4, c_out=8, hdim=32, ks=3, dil=2), eval, with res conv.
    B, L, c_in, c_out, hdim, ks, dil = 2, 16, 4, 8, 32, 3, 2
    keys = jax.random.split(key, 14)
    x = jax.random.normal(keys[0], (B, L, c_in), jnp.float32)   # channels-last view of (B, c_in, L)
    w1 = jax.random.normal(keys[1], (hdim, c_in, ks), jnp.float32) * 0.2
    w2 = jax.random.normal(keys[2], (c_out, hdim, ks), jnp.float32) * 0.2
    wres = jax.random.normal(keys[3], (c_out, c_in), jnp.float32) * 0.2   # 1x1 conv weight
    bres = jax.random.normal(keys[4], (c_out,), jnp.float32) * 0.1
    bn1 = _make_bn(keys[5:9], hdim)
    bn2 = _make_bn(keys[9:13], c_out)

    out = cdil_block(x, w1, w2, wres, bres, bn1, bn2, ks=ks, dil=dil)
    out = jax.block_until_ready(out)
    assert out.shape == (B, L, c_out)

    params = _prepare_params(w1, w2, wres, bres, bn1, bn2, ks=ks)
    ref_m = cdil_block_ref_matched(x, params, ks=ks, dil=dil)
    assert jnp.allclose(out, ref_m, atol=1e-3, rtol=1e-3), "mismatch vs matched reference (test 1)"
    ref_f = cdil_block_ref_f32(x, w1, w2, wres, bres, bn1, bn2, ks=ks, dil=dil)
    assert jnp.allclose(out, ref_f, atol=2.5e-1, rtol=1e-1), "drift vs f32 reference too large (test 1)"

    # --- test 2: identity residual (c_in == c_out == 8), exercises TB > 1 slab path.
    B2, L2, c2, hdim2, ks2, dil2 = 4, 16, 8, 32, 3, 1
    keys2 = jax.random.split(jax.random.fold_in(key, 1), 11)
    x2 = jax.random.normal(keys2[0], (B2, L2, c2), jnp.float32)
    w1b = jax.random.normal(keys2[1], (hdim2, c2, ks2), jnp.float32) * 0.2
    w2b = jax.random.normal(keys2[2], (c2, hdim2, ks2), jnp.float32) * 0.2
    bn1b = _make_bn(keys2[3:7], hdim2)
    bn2b = _make_bn(keys2[7:11], c2)

    out2 = cdil_block(x2, w1b, w2b, None, None, bn1b, bn2b, ks=ks2, dil=dil2)
    out2 = jax.block_until_ready(out2)
    assert out2.shape == (B2, L2, c2)

    params2 = _prepare_params(w1b, w2b, None, None, bn1b, bn2b, ks=ks2)
    ref_m2 = cdil_block_ref_matched(x2, params2, ks=ks2, dil=dil2)
    assert jnp.allclose(out2, ref_m2, atol=1e-3, rtol=1e-3), "mismatch vs matched reference (test 2)"
    ref_f2 = cdil_block_ref_f32(x2, w1b, w2b, None, None, bn1b, bn2b, ks=ks2, dil=dil2)
    assert jnp.allclose(out2, ref_f2, atol=2.5e-1, rtol=1e-1), "drift vs f32 reference too large (test 2)"

    print("KERNEL_OK")
</pallas_src>

<mosaic_0001>
module attributes {stable_mosaic.version = 11 : i64} {
  func.func @cdil_block_kernel(%arg0: i32, %arg1: memref<1x16x4xf32, #tpu.memory_space<vmem>>, %arg2: memref<12x32xbf16, #tpu.memory_space<vmem>>, %arg3: memref<1x32xf32, #tpu.memory_space<vmem>>, %arg4: memref<96x8xbf16, #tpu.memory_space<vmem>>, %arg5: memref<1x8xf32, #tpu.memory_space<vmem>>, %arg6: memref<4x8xbf16, #tpu.memory_space<vmem>>, %arg7: memref<1x8xf32, #tpu.memory_space<vmem>>, %arg8: memref<1x16x8xf32, #tpu.memory_space<vmem>>) attributes {dimension_semantics = [#tpu.dimension_semantics<parallel>], iteration_bounds = array<i64: 2>, scalar_prefetch = 0 : i64, scratch_operands = 0 : i64, tpu.core_type = #tpu.core_type<tc>, window_params = [{transform_indices = @transform_0, window_bounds = array<i64: 1, 16, 4>}, {pipeline_mode = #tpu.pipeline_mode<synchronous>, transform_indices = @transform_1, window_bounds = array<i64: 12, 32>}, {pipeline_mode = #tpu.pipeline_mode<synchronous>, transform_indices = @transform_2, window_bounds = array<i64: 1, 32>}, {pipeline_mode = #tpu.pipeline_mode<synchronous>, transform_indices = @transform_3, window_bounds = array<i64: 96, 8>}, {pipeline_mode = #tpu.pipeline_mode<synchronous>, transform_indices = @transform_4, window_bounds = array<i64: 1, 8>}, {pipeline_mode = #tpu.pipeline_mode<synchronous>, transform_indices = @transform_5, window_bounds = array<i64: 4, 8>}, {pipeline_mode = #tpu.pipeline_mode<synchronous>, transform_indices = @transform_6, window_bounds = array<i64: 1, 8>}, {transform_indices = @transform_7, window_bounds = array<i64: 1, 16, 8>}]} {
    %c0 = arith.constant 0 : index
    %c0_0 = arith.constant 0 : index
    %c0_1 = arith.constant 0 : index
    %0 = vector.load %arg1[%c0, %c0_0, %c0_1] : memref<1x16x4xf32, #tpu.memory_space<vmem>>, vector<1x16x4xf32>
    %c2_i32 = arith.constant 2 : i32
    %1 = tpu.dynamic_rotate %0 by %c2_i32 dim 1 : vector<1x16x4xf32>, i32 -> vector<1x16x4xf32>
    %2 = arith.truncf %1 : vector<1x16x4xf32> to vector<1x16x4xbf16>
    %3 = arith.truncf %0 : vector<1x16x4xf32> to vector<1x16x4xbf16>
    %c14_i32 = arith.constant 14 : i32
    %4 = tpu.dynamic_rotate %0 by %c14_i32 dim 1 : vector<1x16x4xf32>, i32 -> vector<1x16x4xf32>
    %5 = arith.truncf %4 : vector<1x16x4xf32> to vector<1x16x4xbf16>
    %6 = tpu.concatenate %2, %3, %5 in 2 : vector<1x16x4xbf16>, vector<1x16x4xbf16>, vector<1x16x4xbf16> -> vector<1x16x12xbf16>
    %c0_2 = arith.constant 0 : index
    %c0_3 = arith.constant 0 : index
    %7 = vector.load %arg2[%c0_2, %c0_3] : memref<12x32xbf16, #tpu.memory_space<vmem>>, vector<12x32xbf16>
    %cst = arith.constant dense<0.000000e+00> : vector<1x16x32xf32>
    %8 = tpu.matmul %6, %7, %cst {dimension_numbers = #tpu.dot_dimension_numbers<[2], [0], [0, 1], [1], [0, 0, 0, 1, 1, 1], [], []>} : vector<1x16x12xbf16>, vector<12x32xbf16>, vector<1x16x32xf32> -> vector<1x16x32xf32>
    %c0_4 = arith.constant 0 : index
    %c0_5 = arith.constant 0 : index
    %9 = vector.load %arg3[%c0_4, %c0_5] : memref<1x32xf32, #tpu.memory_space<vmem>>, vector<1x32xf32>
    %10 = vector.shape_cast %9 : vector<1x32xf32> to vector<1x1x32xf32>
    %11 = vector.broadcast %10 : vector<1x1x32xf32> to vector<1x16x32xf32>
    %12 = arith.addf %8, %11 : vector<1x16x32xf32>
    %cst_6 = arith.constant 0.000000e+00 : f32
    %13 = vector.broadcast %cst_6 : f32 to vector<1x16x32xf32>
    %14 = arith.maximumf %12, %13 : vector<1x16x32xf32>
    %c2_i32_7 = arith.constant 2 : i32
    %15 = tpu.dynamic_rotate %14 by %c2_i32_7 dim 1 : vector<1x16x32xf32>, i32 -> vector<1x16x32xf32>
    %16 = arith.truncf %15 : vector<1x16x32xf32> to vector<1x16x32xbf16>
    %17 = arith.truncf %14 : vector<1x16x32xf32> to vector<1x16x32xbf16>
    %c14_i32_8 = arith.constant 14 : i32
    %18 = tpu.dynamic_rotate %14 by %c14_i32_8 dim 1 : vector<1x16x32xf32>, i32 -> vector<1x16x32xf32>
    %19 = arith.truncf %18 : vector<1x16x32xf32> to vector<1x16x32xbf16>
    %20 = tpu.concatenate %16, %17, %19 in 2 : vector<1x16x32xbf16>, vector<1x16x32xbf16>, vector<1x16x32xbf16> -> vector<1x16x96xbf16>
    %c0_9 = arith.constant 0 : index
    %c0_10 = arith.constant 0 : index
    %21 = vector.load %arg4[%c0_9, %c0_10] : memref<96x8xbf16, #tpu.memory_space<vmem>>, vector<96x8xbf16>
    %cst_11 = arith.constant dense<0.000000e+00> : vector<1x16x8xf32>
    %22 = tpu.matmul %20, %21, %cst_11 {dimension_numbers = #tpu.dot_dimension_numbers<[2], [0], [0, 1], [1], [0, 0, 0, 1, 1, 1], [], []>} : vector<1x16x96xbf16>, vector<96x8xbf16>, vector<1x16x8xf32> -> vector<1x16x8xf32>
    %c0_12 = arith.constant 0 : index
    %c0_13 = arith.constant 0 : index
    %23 = vector.load %arg5[%c0_12, %c0_13] : memref<1x8xf32, #tpu.memory_space<vmem>>, vector<1x8xf32>
    %24 = vector.shape_cast %23 : vector<1x8xf32> to vector<1x1x8xf32>
    %25 = vector.broadcast %24 : vector<1x1x8xf32> to vector<1x16x8xf32>
    %26 = arith.addf %22, %25 : vector<1x16x8xf32>
    %cst_14 = arith.constant 0.000000e+00 : f32
    %27 = vector.broadcast %cst_14 : f32 to vector<1x16x8xf32>
    %28 = arith.maximumf %26, %27 : vector<1x16x8xf32>
    %29 = arith.truncf %0 : vector<1x16x4xf32> to vector<1x16x4xbf16>
    %c0_15 = arith.constant 0 : index
    %c0_16 = arith.constant 0 : index
    %30 = vector.load %arg6[%c0_15, %c0_16] : memref<4x8xbf16, #tpu.memory_space<vmem>>, vector<4x8xbf16>
    %cst_17 = arith.constant dense<0.000000e+00> : vector<1x16x8xf32>
    %31 = tpu.matmul %29, %30, %cst_17 {dimension_numbers = #tpu.dot_dimension_numbers<[2], [0], [0, 1], [1], [0, 0, 0, 1, 1, 1], [], []>} : vector<1x16x4xbf16>, vector<4x8xbf16>, vector<1x16x8xf32> -> vector<1x16x8xf32>
    %c0_18 = arith.constant 0 : index
    %c0_19 = arith.constant 0 : index
    %32 = vector.load %arg7[%c0_18, %c0_19] : memref<1x8xf32, #tpu.memory_space<vmem>>, vector<1x8xf32>
    %33 = vector.shape_cast %32 : vector<1x8xf32> to vector<1x1x8xf32>
    %34 = vector.broadcast %33 : vector<1x1x8xf32> to vector<1x16x8xf32>
    %35 = arith.addf %31, %34 : vector<1x16x8xf32>
    %36 = arith.addf %28, %35 : vector<1x16x8xf32>
    %c0_20 = arith.constant 0 : index
    %c0_21 = arith.constant 0 : index
    %c0_22 = arith.constant 0 : index
    %37 = vector.load %arg8[%c0_20, %c0_21, %c0_22] : memref<1x16x8xf32, #tpu.memory_space<vmem>>, vector<1x16x8xf32>
    tpu.vector_store %arg8[%c0_20, %c0_21, %c0_22], %36 {strides = array<i32>} : memref<1x16x8xf32, #tpu.memory_space<vmem>>, vector<1x16x8xf32>,
    return
  }
  func.func @transform_0(%arg0: i32) -> (i32, i32, i32) {
    %c0_i32 = arith.constant 0 : i32
    %c0_i32_0 = arith.constant 0 : i32
    %c0_i32_1 = arith.constant 0 : i32
    return %arg0, %c0_i32, %c0_i32_0 : i32, i32, i32
  }
  func.func @transform_1(%arg0: i32) -> (i32, i32) {
    %c0_i32 = arith.constant 0 : i32
    %c0_i32_0 = arith.constant 0 : i32
    %c0_i32_1 = arith.constant 0 : i32
    return %c0_i32, %c0_i32_0 : i32, i32
  }
  func.func @transform_2(%arg0: i32) -> (i32, i32) {
    %c0_i32 = arith.constant 0 : i32
    %c0_i32_0 = arith.constant 0 : i32
    %c0_i32_1 = arith.constant 0 : i32
    return %c0_i32, %c0_i32_0 : i32, i32
  }
  func.func @transform_3(%arg0: i32) -> (i32, i32) {
    %c0_i32 = arith.constant 0 : i32
    %c0_i32_0 = arith.constant 0 : i32
    %c0_i32_1 = arith.constant 0 : i32
    return %c0_i32, %c0_i32_0 : i32, i32
  }
  func.func @transform_4(%arg0: i32) -> (i32, i32) {
    %c0_i32 = arith.constant 0 : i32
    %c0_i32_0 = arith.constant 0 : i32
    %c0_i32_1 = arith.constant 0 : i32
    return %c0_i32, %c0_i32_0 : i32, i32
  }
  func.func @transform_5(%arg0: i32) -> (i32, i32) {
    %c0_i32 = arith.constant 0 : i32
    %c0_i32_0 = arith.constant 0 : i32
    %c0_i32_1 = arith.constant 0 : i32
    return %c0_i32, %c0_i32_0 : i32, i32
  }
  func.func @transform_6(%arg0: i32) -> (i32, i32) {
    %c0_i32 = arith.constant 0 : i32
    %c0_i32_0 = arith.constant 0 : i32
    %c0_i32_1 = arith.constant 0 : i32
    return %c0_i32, %c0_i32_0 : i32, i32
  }
  func.func @transform_7(%arg0: i32) -> (i32, i32, i32) {
    %c0_i32 = arith.constant 0 : i32
    %c0_i32_0 = arith.constant 0 : i32
    %c0_i32_1 = arith.constant 0 : i32
    return %arg0, %c0_i32, %c0_i32_0 : i32, i32, i32
  }
}

</mosaic_0001>

<llo_original>
// kernel: tpu_custom_call.1
$region0: #{tpu_custom_call.1}
  #allocation0 [shape = 'u32[]', space=smem, size = 0x4, offset = 0x4, fixed_abs, tag = 'smem constant byte address 0x4 - core index']
  #allocation1 [shape = 'u32[144,128]{1,0:T(1,128)}', space=vmem, size = 0x12000, scoped, tag = 'internal scratch']
  %s0 = inlined_call_operand.vmem [shape: f32[2,16,4], index: 0, kind: input, shape index: {}]
  %s1 = inlined_call_operand.vmem [shape: bf16[12,32], index: 1, kind: input, shape index: {}]
  %s2 = inlined_call_operand.vmem [shape: f32[1,32], index: 2, kind: input, shape index: {}]
  %s3 = inlined_call_operand.vmem [shape: bf16[96,8], index: 3, kind: input, shape index: {}]
  %s4 = inlined_call_operand.vmem [shape: f32[1,8], index: 4, kind: input, shape index: {}]
  %s5 = inlined_call_operand.vmem [shape: bf16[4,8], index: 5, kind: input, shape index: {}]
  %s6 = inlined_call_operand.vmem [shape: f32[1,8], index: 6, kind: input, shape index: {}]
  %s7 = inlined_call_operand.vmem [shape: f32[2,16,8], index: 7, kind: output, shape index: {}]
  %s8 = sld [smem:[#allocation0]]
  $region61: #{tpu_custom_call.1} parent=0
    _
  %s10 = ssub.s32 1, %s8
  %s11 = scalar_select 0, %s10, %s8
  loop: start=0, step=1, limit=4
  $region2: #{tpu_custom_call.1} parent=0 // loop_pre_header
    _
  $region3: #{tpu_custom_call.1} parent=0 // loop_header
    %s13 = sphi 0, %s17
    %p14 = scmp.ge.s32.totalorder %s13, 4
    %s23 = sphi 0, %s25
    %s26 = sphi 0, %s23
    %s27 = sphi 0, %s26
    %s43 = sphi 0, %s27
    %s47 = sphi 0, %s47
    %s49 = sphi 0, %s47
    %s50 = sphi 0, %s49
    %s64 = sphi 0, %s50
    %s68 = sphi 0, %s68
    %s70 = sphi 0, %s68
    %s71 = sphi 0, %s70
    %s85 = sphi 0, %s71
    %s89 = sphi 0, %s89
    %s91 = sphi 0, %s89
    %s92 = sphi 0, %s91
    %s106 = sphi 0, %s92
    %s110 = sphi 0, %s110
    %s112 = sphi 0, %s110
    %s113 = sphi 0, %s112
    %s127 = sphi 0, %s113
    %s131 = sphi 0, %s131
    %s133 = sphi 0, %s131
    %s134 = sphi 0, %s133
    %s148 = sphi 0, %s134
    %s152 = sphi 0, %s152
    %s154 = sphi 0, %s152
    %s155 = sphi 0, %s154
    %s169 = sphi 0, %s155
    %s175 = sphi 0, %s177
    %s178 = sphi 0, %s175
    %s179 = sphi 0, %s178
    %s195 = sphi 0, %s179
  $region4: #{tpu_custom_call.1} parent=0 // loop_header_branch
    %16 = sbr.rel (%p14) target = $region8
  $region5: #{tpu_custom_call.1} parent=0 // loop_body
    %s18 = ssub.s32 %s13, 1
    %s19 = ssub.s32 %s13, 2
    %s20 = sadd.s32 %s13, 1
    %s21 = ssub.s32 %s13, %s20
    %p22 = scmp.eq.s32.totalorder %s21, 0
    %s24 = sadd.s32 %s23, 1
    %s25 = scalar_select %p22, %s23, %s24
    %p28 = pneg %p22
    %p29 = scmp.eq.s32.totalorder %s13, 1
    %p30 = por %p28, %p29
    %p31 = scmp.ne.s32.totalorder %s23, %s26
    %p32 = scmp.eq.s32.totalorder %s13, 0
    %p33 = por %p31, %p32
    %p34 = scmp.ne.s32.totalorder %s23, %s26
    %p35 = scmp.eq.s32.totalorder %s18, 1
    %p36 = por %p34, %p35
    %p37 = scmp.ne.s32.totalorder %s26, %s27
    %p38 = scmp.eq.s32.totalorder %s18, 0
    %p39 = por %p37, %p38
    %p40 = scmp.ne.s32.totalorder %s26, %s27
    %p41 = scmp.eq.s32.totalorder %s19, 1
    %p42 = por %p40, %p41
    %p44 = scmp.ne.s32.totalorder %s27, %s43
    %p45 = scmp.eq.s32.totalorder %s19, 0
    %p46 = por %p44, %p45
    %s48 = sadd.s32 %s47, 1
    %p51 = scmp.eq.s32.totalorder %s13, 1
    %p52 = scmp.ne.s32.totalorder %s47, %s49
    %p53 = scmp.eq.s32.totalorder %s13, 0
    %p54 = por %p52, %p53
    %p55 = scmp.ne.s32.totalorder %s47, %s49
    %p56 = scmp.eq.s32.totalorder %s18, 1
    %p57 = por %p55, %p56
    %p58 = scmp.ne.s32.totalorder %s49, %s50
    %p59 = scmp.eq.s32.totalorder %s18, 0
    %p60 = por %p58, %p59
    %p61 = scmp.ne.s32.totalorder %s49, %s50
    %p62 = scmp.eq.s32.totalorder %s19, 1
    %p63 = por %p61, %p62
    %p65 = scmp.ne.s32.totalorder %s50, %s64
    %p66 = scmp.eq.s32.totalorder %s19, 0
    %p67 = por %p65, %p66
    %s69 = sadd.s32 %s68, 1
    %p72 = scmp.eq.s32.totalorder %s13, 1
    %p73 = scmp.ne.s32.totalorder %s68, %s70
    %p74 = scmp.eq.s32.totalorder %s13, 0
    %p75 = por %p73, %p74
    %p76 = scmp.ne.s32.totalorder %s68, %s70
    %p77 = scmp.eq.s32.totalorder %s18, 1
    %p78 = por %p76, %p77
    %p79 = scmp.ne.s32.totalorder %s70, %s71
    %p80 = scmp.eq.s32.totalorder %s18, 0
    %p81 = por %p79, %p80
    %p82 = scmp.ne.s32.totalorder %s70, %s71
    %p83 = scmp.eq.s32.totalorder %s19, 1
    %p84 = por %p82, %p83
    %p86 = scmp.ne.s32.totalorder %s71, %s85
    %p87 = scmp.eq.s32.totalorder %s19, 0
    %p88 = por %p86, %p87
    %s90 = sadd.s32 %s89, 1
    %p93 = scmp.eq.s32.totalorder %s13, 1
    %p94 = scmp.ne.s32.totalorder %s89, %s91
    %p95 = scmp.eq.s32.totalorder %s13, 0
    %p96 = por %p94, %p95
    %p97 = scmp.ne.s32.totalorder %s89, %s91
    %p98 = scmp.eq.s32.totalorder %s18, 1
    %p99 = por %p97, %p98
    %p100 = scmp.ne.s32.totalorder %s91, %s92
    %p101 = scmp.eq.s32.totalorder %s18, 0
    %p102 = por %p100, %p101
    %p103 = scmp.ne.s32.totalorder %s91, %s92
    %p104 = scmp.eq.s32.totalorder %s19, 1
    %p105 = por %p103, %p104
    %p107 = scmp.ne.s32.totalorder %s92, %s106
    %p108 = scmp.eq.s32.totalorder %s19, 0
    %p109 = por %p107, %p108
    %s111 = sadd.s32 %s110, 1
    %p114 = scmp.eq.s32.totalorder %s13, 1
    %p115 = scmp.ne.s32.totalorder %s110, %s112
    %p116 = scmp.eq.s32.totalorder %s13, 0
    %p117 = por %p115, %p116
    %p118 = scmp.ne.s32.totalorder %s110, %s112
    %p119 = scmp.eq.s32.totalorder %s18, 1
    %p120 = por %p118, %p119
    %p121 = scmp.ne.s32.totalorder %s112, %s113
    %p122 = scmp.eq.s32.totalorder %s18, 0
    %p123 = por %p121, %p122
    %p124 = scmp.ne.s32.totalorder %s112, %s113
    %p125 = scmp.eq.s32.totalorder %s19, 1
    %p126 = por %p124, %p125
    %p128 = scmp.ne.s32.totalorder %s113, %s127
    %p129 = scmp.eq.s32.totalorder %s19, 0
    %p130 = por %p128, %p129
    %s132 = sadd.s32 %s131, 1
    %p135 = scmp.eq.s32.totalorder %s13, 1
    %p136 = scmp.ne.s32.totalorder %s131, %s133
    %p137 = scmp.eq.s32.totalorder %s13, 0
    %p138 = por %p136, %p137
    %p139 = scmp.ne.s32.totalorder %s131, %s133
    %p140 = scmp.eq.s32.totalorder %s18, 1
    %p141 = por %p139, %p140
    %p142 = scmp.ne.s32.totalorder %s133, %s134
    %p143 = scmp.eq.s32.totalorder %s18, 0
    %p144 = por %p142, %p143
    %p145 = scmp.ne.s32.totalorder %s133, %s134
    %p146 = scmp.eq.s32.totalorder %s19, 1
    %p147 = por %p145, %p146
    %p149 = scmp.ne.s32.totalorder %s134, %s148
    %p150 = scmp.eq.s32.totalorder %s19, 0
    %p151 = por %p149, %p150
    %s153 = sadd.s32 %s152, 1
    %p156 = scmp.eq.s32.totalorder %s13, 1
    %p157 = scmp.ne.s32.totalorder %s152, %s154
    %p158 = scmp.eq.s32.totalorder %s13, 0
    %p159 = por %p157, %p158
    %p160 = scmp.ne.s32.totalorder %s152, %s154
    %p161 = scmp.eq.s32.totalorder %s18, 1
    %p162 = por %p160, %p161
    %p163 = scmp.ne.s32.totalorder %s154, %s155
    %p164 = scmp.eq.s32.totalorder %s18, 0
    %p165 = por %p163, %p164
    %p166 = scmp.ne.s32.totalorder %s154, %s155
    %p167 = scmp.eq.s32.totalorder %s19, 1
    %p168 = por %p166, %p167
    %p170 = scmp.ne.s32.totalorder %s155, %s169
    %p171 = scmp.eq.s32.totalorder %s19, 0
    %p172 = por %p170, %p171
    %s173 = ssub.s32 %s13, %s20
    %p174 = scmp.eq.s32.totalorder %s173, 0
    %s176 = sadd.s32 %s175, 1
    %s177 = scalar_select %p174, %s175, %s176
    %p180 = pneg %p174
    %p181 = scmp.eq.s32.totalorder %s13, 1
    %p182 = por %p180, %p181
    %p183 = scmp.ne.s32.totalorder %s175, %s178
    %p184 = scmp.eq.s32.totalorder %s13, 0
    %p185 = por %p183, %p184
    %p186 = scmp.ne.s32.totalorder %s175, %s178
    %p187 = scmp.eq.s32.totalorder %s18, 1
    %p188 = por %p186, %p187
    %p189 = scmp.ne.s32.totalorder %s178, %s179
    %p190 = scmp.eq.s32.totalorder %s18, 0
    %p191 = por %p189, %p190
    %p192 = scmp.ne.s32.totalorder %s178, %s179
    %p193 = scmp.eq.s32.totalorder %s19, 1
    %p194 = por %p192, %p193
    %p196 = scmp.ne.s32.totalorder %s179, %s195
    %p197 = scmp.eq.s32.totalorder %s19, 0
    %p198 = por %p196, %p197
    %p199 = scmp.le.s32.totalorder 1, %s13
    %p200 = scmp.lt.s32.totalorder %s13, 3
    %p201 = pnand %p199, %p200
    %p202 = pneg %p201
    // Predicated region
    $region9: #{tpu_custom_call.1} parent=5 // pred_check
      _
    $region10: #{tpu_custom_call.1} parent=5 // pred_check_branch
      %204 = sbr.rel (%p201) target = $region12
    $region11: #{tpu_custom_call.1} parent=5 // pred_region
      %s205 = ssub.s32 %s13, 1
      // Predicated region
      $region13: #{tpu_custom_call.1} parent=11 // pred_check
        %p206 = pneg %p60
      $region14: #{tpu_custom_call.1} parent=11 // pred_check_branch
        %208 = sbr.rel (%p206) target = $region16
      $region15: #{tpu_custom_call.1} parent=11 // pred_region
        _
      $region16: #{tpu_custom_call.1} parent=11 // pred_fallthru
        _
      // Predicated region
      $region17: #{tpu_custom_call.1} parent=11 // pred_check
        %p209 = pneg %p81
      $region18: #{tpu_custom_call.1} parent=11 // pred_check_branch
        %211 = sbr.rel (%p209) target = $region20
      $region19: #{tpu_custom_call.1} parent=11 // pred_region
        _
      $region20: #{tpu_custom_call.1} parent=11 // pred_fallthru
        _
      // Predicated region
      $region21: #{tpu_custom_call.1} parent=11 // pred_check
        %p212 = pneg %p102
      $region22: #{tpu_custom_call.1} parent=11 // pred_check_branch
        %214 = sbr.rel (%p212) target = $region24
      $region23: #{tpu_custom_call.1} parent=11 // pred_region
        _
      $region24: #{tpu_custom_call.1} parent=11 // pred_fallthru
        _
      // Predicated region
      $region25: #{tpu_custom_call.1} parent=11 // pred_check
        %p215 = pneg %p123
      $region26: #{tpu_custom_call.1} parent=11 // pred_check_branch
        %217 = sbr.rel (%p215) target = $region28
      $region27: #{tpu_custom_call.1} parent=11 // pred_region
        _
      $region28: #{tpu_custom_call.1} parent=11 // pred_fallthru
        _
      // Predicated region
      $region29: #{tpu_custom_call.1} parent=11 // pred_check
        %p218 = pneg %p144
      $region30: #{tpu_custom_call.1} parent=11 // pred_check_branch
        %220 = sbr.rel (%p218) target = $region32
      $region31: #{tpu_custom_call.1} parent=11 // pred_region
        _
      $region32: #{tpu_custom_call.1} parent=11 // pred_fallthru
        _
      // Predicated region
      $region33: #{tpu_custom_call.1} parent=11 // pred_check
        %p221 = pneg %p165
      $region34: #{tpu_custom_call.1} parent=11 // pred_check_branch
        %223 = sbr.rel (%p221) target = $region36
      $region35: #{tpu_custom_call.1} parent=11 // pred_region
        _
      $region36: #{tpu_custom_call.1} parent=11 // pred_fallthru
        _
    $region12: #{tpu_custom_call.1} parent=5 // pred_fallthru
      _
    %p224 = scmp.lt.s32.totalorder %s13, 2
    // Predicated region
    $region37: #{tpu_custom_call.1} parent=5 // pred_check
      %p225 = pneg %p224
    $region38: #{tpu_custom_call.1} parent=5 // pred_check_branch
      %227 = sbr.rel (%p225) target = $region40
    $region39: #{tpu_custom_call.1} parent=5 // pred_region
      // Predicated region
      $region41: #{tpu_custom_call.1} parent=39 // pred_check
        %p228 = pneg %p33
      $region42: #{tpu_custom_call.1} parent=39 // pred_check_branch
        %230 = sbr.rel (%p228) target = $region44
      $region43: #{tpu_custom_call.1} parent=39 // pred_region
        %p231 = scmp.lt.s32.totalorder %s13, 1
        %s232 = scalar_select %p231, %s13, 1
        %s233 = smul.addr %s232, 2
        %s234 = smul.addr %s233, 8
        %s235 = scalar_lea.vmem %s0, %s234
      $region44: #{tpu_custom_call.1} parent=39 // pred_fallthru
        _
    $region40: #{tpu_custom_call.1} parent=5 // pred_fallthru
      _
    %p236 = scmp.le.s32.totalorder 1, %s13
    %p237 = scmp.lt.s32.totalorder %s13, 3
    %p238 = pnand %p236, %p237
    %p239 = pneg %p238
    // Predicated region
    $region45: #{tpu_custom_call.1} parent=5 // pred_check
      _
    $region46: #{tpu_custom_call.1} parent=5 // pred_check_branch
      %241 = sbr.rel (%p238) target = $region48
    $region47: #{tpu_custom_call.1} parent=5 // pred_region
      %s242 = ssub.s32 %s13, 1
      %p243 = scmp.lt.s32.totalorder %s18, 1
      %s244 = scalar_select %p243, %s18, 1
      %s245 = smul.addr %s244, 2
      %s246 = smul.addr %s245, 8
      %s247 = scalar_lea.vmem %s0, %s246
      %p248 = pneg %p39
      %p249 = pneg %p36
      %p250 = pneg %p60
      %p251 = pneg %p57
      %p252 = pneg %p81
      %p253 = pneg %p78
      %p254 = pneg %p102
      %p255 = pneg %p99
      %p256 = pneg %p123
      %p257 = pneg %p120
      %p258 = pneg %p144
      %p259 = pneg %p141
      %p260 = pneg %p165
      %p261 = pneg %p162
      %p262 = pneg %p191
      %p263 = pneg %p188
      %p264 = scmp.lt.s32.totalorder %s18, 1
      %s265 = scalar_select %p264, %s18, 1
      %s266 = smul.addr %s265, 2
      %s267 = smul.addr %s266, 8
      %s268 = scalar_lea.vmem %s7, %s267
      %p269 = scmp.lt.s32.totalorder %s18, 1
      %s270 = scalar_select %p269, %s18, 1
      %s271 = smul.addr %s270, 2
      %s272 = smul.addr %s271, 8
      %s273 = scalar_lea.vmem %s0, %s272
      %p274 = scmp.lt.s32.totalorder %s18, 1
      %s275 = scalar_select %p274, %s18, 1
      %s276 = smul.addr %s275, 2
      %s277 = smul.addr %s276, 8
      %s278 = scalar_lea.vmem %s7, %s277
      %v280 = vld [vmem:[%s273] sm:$0xff]
      %v281 = vld [vmem:[%s273 + $0x8] sm:$0xff]
      %v282 = vrot.slane %v280, 6
      %v283 = vrot.slane %v281, 6
      %v284 = vlaneseq
      %v285 = vshrl.u32 %v284, 7
      %vm286 = vcmp.lt.s32.totalorder %v285, 2
      %v287 = vsel %vm286, %v282, %v283
      %v288 = vsel %vm286, %v283, %v282
      %v289 = vpack.c.bf16 %v287, %v288
      %v290 = vpack.c.bf16 %v281, %v280
      %v291 = vrot.slane %v280, 2
      %v292 = vrot.slane %v281, 2
      %vm293 = vcmp.lt.s32.totalorder %v285, 6
      %v294 = vsel %vm293, %v291, %v292
      %v295 = vsel %vm293, %v292, %v291
      %v296 = vpack.c.bf16 %v295, %v294
      %298 = vrot.lane.b32.xlu0 %v290, 4
      %v299 = vpop.permute.xlu0 %298
      %301 = vrot.lane.b32.xlu0 %v296, 8
      %v302 = vpop.permute.xlu0 %301
      %vm303 = vcmask 31744
      %v306 = vsel %vm303, %v289, %v299
      %vm307 = vcmask 64512
      %v309 = vsel %vm307, %v306, %v302
      %v310 = vld [vmem:[%s1] sm:$0xf]
      %v311 = vld [vmem:[%s1 + $0x4] sm:$0x3]
      %v312 = vld [vmem:[%s2] sm:$0x1]
      %v314 = vlaneseq
      %v315 = vshrl.u32 %v314, 7
      %v316 = vsub.s32 0, %v315
      %v317 = vrot.slane %v312, %v316
      %v321 = vunpack.c.l.b16 %v310
      %v322 = vunpack.c.l.b16 %v311
      %v323 = vpack.c.b16 %v322, %v321
      %vm324 = vcmask 97280
      %v325 = vsel %vm324, %v309, 0
      %vm327 = vcmask 1045504
      %v329 = vsel %vm327, %v323, 0
      %331 = vmatprep.subr.bf16.mxu0 0
      %332 = vmatpush1.bf16.msra.mxu0 0
      %333 = vmatprep.subr.bf16.mxu0 0
      %334 = vmatpush1.bf16.msra.mxu0 0
      %335 = vmatprep.subr.bf16.mxu0 0
      %336 = vmatpush1.bf16.msra.mxu0 0
      %337 = vmatprep.subr.bf16.mxu0 0
      %338 = vmatpush1.bf16.msra.mxu0 0
      %339 = vmatprep.subr.bf16.mxu0 0
      %340 = vmatpush1.bf16.msra.mxu0 0
      %341 = vmatprep.subr.bf16.mxu0 0
      %342 = vmatpush1.bf16.msra.mxu0 0
      %343 = vmatprep.subr.bf16.mxu0 0
      %344 = vmatpush1.bf16.msra.mxu0 0
      %345 = vmatprep.subr.bf16.mxu0 0
      %346 = vmatpush1.bf16.msra.mxu0 %v329
      %347 = vmatprep.subr.bf16.mxu0 0
      %348 = vmatpush2.bf16.msra.mxu0 0
      %349 = vmatprep.subr.bf16.mxu0 0
      %350 = vmatpush2.bf16.msra.mxu0 0
      %351 = vmatprep.subr.bf16.mxu0 0
      %352 = vmatpush2.bf16.msra.mxu0 0
      %353 = vmatprep.subr.bf16.mxu0 0
      %354 = vmatpush2.bf16.msra.mxu0 0
      %355 = vmatprep.subr.bf16.mxu0 0
      %356 = vmatpush2.bf16.msra.mxu0 0
      %357 = vmatprep.subr.bf16.mxu0 0
      %358 = vmatpush2.bf16.msra.mxu0 0
      %359 = vmatprep.subr.bf16.mxu0 0
      %360 = vmatpush2.bf16.msra.mxu0 0
      %361 = vmatprep.subr.bf16.mxu0 0
      %362 = vmatpush2.bf16.msra.mxu0 0
      %363 = vmatprep.mubr.bf16.mxu0 0
      %364 = vmatmul.mubr.bf16.gmra.mxu0 %v325
      %v365 = vpop.f32.mrf.mxu0
      %v366 = vadd.f32 %v317, %v365
      %v367 = vpop.f32.mrf.mxu0
      %v368 = vpop.f32.mrf.mxu0
      %v369 = vadd.f32 %v317, %v368
      %v370 = vpop.f32.mrf.mxu0
      %371 = vdwg.mxu0
      %v372 = vmax.f32 %v366, 0.0
      %v373 = vmax.f32 %v369, 0.0
      %v374 = vrot.slane %v372, 6
      %v375 = vrot.slane %v373, 6
      %v376 = vsel %vm286, %v374, %v375
      %v377 = vsel %vm286, %v375, %v374
      %v378 = vpack.c.bf16 %v376, %v377
      %v379 = vpack.c.bf16 %v373, %v372
      %v380 = vrot.slane %v372, 2
      %v381 = vrot.slane %v373, 2
      %v382 = vsel %vm293, %v380, %v381
      %v383 = vsel %vm293, %v381, %v380
      %v384 = vpack.c.bf16 %v383, %v382
      %386 = vrot.lane.b32.xlu0 %v379, 32
      %v387 = vpop.permute.xlu0 %386
      %389 = vrot.lane.b32.xlu0 %v384, 64
      %v390 = vpop.permute.xlu0 %389
      %vm391 = vcmask 261120
      %v394 = vsel %vm391, %v378, %v387
      %vm395 = vcmask 523264
      %v397 = vsel %vm395, %v394, %v390
      %v398 = vld [vmem:[%s3] sm:$0xf]
      %v399 = vld [vmem:[%s3 + $0x4] sm:$0xf]
      %v400 = vld [vmem:[%s3 + $0x8] sm:$0xf]
      %v401 = vld [vmem:[%s3 + $0xc] sm:$0xf]
      %v402 = vld [vmem:[%s3 + $0x10] sm:$0xf]
      %v403 = vld [vmem:[%s3 + $0x14] sm:$0xf]
      %v404 = vld [vmem:[%s3 + $0x18] sm:$0xf]
      %v405 = vld [vmem:[%s3 + $0x1c] sm:$0xf]
      %v406 = vld [vmem:[%s3 + $0x20] sm:$0xf]
      %v407 = vld [vmem:[%s3 + $0x24] sm:$0xf]
      %v408 = vld [vmem:[%s3 + $0x28] sm:$0xf]
      %v409 = vld [vmem:[%s3 + $0x2c] sm:$0xf]
      %v410 = vld [vmem:[%s4] sm:$0x1]
      %v412 = vlaneseq
      %v413 = vshrl.u32 %v412, 7
      %v414 = vsub.s32 0, %v413
      %v415 = vrot.slane %v410, %v414
      %v429 = vunpack.c.l.b16 %v398
      %v430 = vunpack.c.l.b16 %v399
      %v431 = vunpack.c.l.b16 %v400
      %v432 = vunpack.c.l.b16 %v401
      %v433 = vunpack.c.l.b16 %v402
      %v434 = vunpack.c.l.b16 %v403
      %v435 = vunpack.c.l.b16 %v404
      %v436 = vunpack.c.l.b16 %v405
      %v437 = vunpack.c.l.b16 %v406
      %v438 = vunpack.c.l.b16 %v407
      %v439 = vunpack.c.l.b16 %v408
      %v440 = vunpack.c.l.b16 %v409
      %v441 = vpack.c.b16 %v430, %v429
      %v442 = vpack.c.b16 %v432, %v431
      %v443 = vpack.c.b16 %v434, %v433
      %v444 = vpack.c.b16 %v436, %v435
      %v445 = vpack.c.b16 %v438, %v437
      %v446 = vpack.c.b16 %v440, %v439
      %vm453 = vcmask 785408
      %v454 = vsel %vm453, %v397, 0
      %456 = vmatprep.subr.bf16.mxu0 0
      %457 = vmatpush1.bf16.msra.mxu0 0
      %458 = vmatprep.subr.bf16.mxu0 0
      %459 = vmatpush1.bf16.msra.mxu0 0
      %460 = vmatprep.subr.bf16.mxu0 0
      %461 = vmatpush1.bf16.msra.mxu0 %v446
      %462 = vmatprep.subr.bf16.mxu0 0
      %463 = vmatpush1.bf16.msra.mxu0 %v445
      %464 = vmatprep.subr.bf16.mxu0 0
      %465 = vmatpush1.bf16.msra.mxu0 %v444
      %466 = vmatprep.subr.bf16.mxu0 0
      %467 = vmatpush1.bf16.msra.mxu0 %v443
      %468 = vmatprep.subr.bf16.mxu0 0
      %469 = vmatpush1.bf16.msra.mxu0 %v442
      %470 = vmatprep.subr.bf16.mxu0 0
      %471 = vmatpush1.bf16.msra.mxu0 %v441
      %472 = vmatprep.subr.bf16.mxu0 0
      %473 = vmatpush2.bf16.msra.mxu0 0
      %474 = vmatprep.subr.bf16.mxu0 0
      %475 = vmatpush2.bf16.msra.mxu0 0
      %476 = vmatprep.subr.bf16.mxu0 0
      %477 = vmatpush2.bf16.msra.mxu0 0
      %478 = vmatprep.subr.bf16.mxu0 0
      %479 = vmatpush2.bf16.msra.mxu0 0
      %480 = vmatprep.subr.bf16.mxu0 0
      %481 = vmatpush2.bf16.msra.mxu0 0
      %482 = vmatprep.subr.bf16.mxu0 0
      %483 = vmatpush2.bf16.msra.mxu0 0
      %484 = vmatprep.subr.bf16.mxu0 0
      %485 = vmatpush2.bf16.msra.mxu0 0
      %486 = vmatprep.subr.bf16.mxu0 0
      %487 = vmatpush2.bf16.msra.mxu0 0
      %488 = vmatprep.mubr.bf16.mxu0 0
      %489 = vmatmul.mubr.bf16.gmra.mxu0 %v454
      %v490 = vpop.f32.mrf.mxu0
      %v491 = vadd.f32 %v415, %v490
      %v492 = vpop.f32.mrf.mxu0
      %v493 = vpop.f32.mrf.mxu0
      %v494 = vadd.f32 %v415, %v493
      %v495 = vpop.f32.mrf.mxu0
      %496 = vdwg.mxu0
      %v497 = vmax.f32 %v491, 0.0
      %v498 = vmax.f32 %v494, 0.0
      %v499 = vld [vmem:[%s5] sm:$0x3]
      %v500 = vld [vmem:[%s6] sm:$0x1]
      %v502 = vlaneseq
      %v503 = vshrl.u32 %v502, 7
      %v504 = vsub.s32 0, %v503
      %v505 = vrot.slane %v500, %v504
      %v508 = vsel %vm303, %v290, 0
      %vm510 = vcmask 1041408
      %v512 = vsel %vm510, %v499, 0
      %514 = vmatprep.subr.bf16.mxu0 0
      %515 = vmatpush1.bf16.msra.mxu0 0
      %516 = vmatprep.subr.bf16.mxu0 0
      %517 = vmatpush1.bf16.msra.mxu0 0
      %518 = vmatprep.subr.bf16.mxu0 0
      %519 = vmatpush1.bf16.msra.mxu0 0
      %520 = vmatprep.subr.bf16.mxu0 0
      %521 = vmatpush1.bf16.msra.mxu0 0
      %522 = vmatprep.subr.bf16.mxu0 0
      %523 = vmatpush1.bf16.msra.mxu0 0
      %524 = vmatprep.subr.bf16.mxu0 0
      %525 = vmatpush1.bf16.msra.mxu0 0
      %526 = vmatprep.subr.bf16.mxu0 0
      %527 = vmatpush1.bf16.msra.mxu0 0
      %528 = vmatprep.subr.bf16.mxu0 0
      %529 = vmatpush1.bf16.msra.mxu0 %v512
      %530 = vmatprep.subr.bf16.mxu0 0
      %531 = vmatpush2.bf16.msra.mxu0 0
      %532 = vmatprep.subr.bf16.mxu0 0
      %533 = vmatpush2.bf16.msra.mxu0 0
      %534 = vmatprep.subr.bf16.mxu0 0
      %535 = vmatpush2.bf16.msra.mxu0 0
      %536 = vmatprep.subr.bf16.mxu0 0
      %537 = vmatpush2.bf16.msra.mxu0 0
      %538 = vmatprep.subr.bf16.mxu0 0
      %539 = vmatpush2.bf16.msra.mxu0 0
      %540 = vmatprep.subr.bf16.mxu0 0
      %541 = vmatpush2.bf16.msra.mxu0 0
      %542 = vmatprep.subr.bf16.mxu0 0
      %543 = vmatpush2.bf16.msra.mxu0 0
      %544 = vmatprep.subr.bf16.mxu0 0
      %545 = vmatpush2.bf16.msra.mxu0 0
      %546 = vmatprep.mubr.bf16.mxu0 0
      %547 = vmatmul.mubr.bf16.gmra.mxu0 %v508
      %v548 = vpop.f32.mrf.mxu0
      %v549 = vadd.f32 %v505, %v548
      %v550 = vpop.f32.mrf.mxu0
      %v551 = vpop.f32.mrf.mxu0
      %v552 = vadd.f32 %v505, %v551
      %v553 = vpop.f32.mrf.mxu0
      %554 = vdwg.mxu0
      %v555 = vadd.f32 %v497, %v549
      %v556 = vadd.f32 %v498, %v552
      %557 = vst.msk [vmem:[%s278] sm:$0xff] %vm307, %v555
      %558 = vst.msk [vmem:[%s278 + $0x8] sm:$0xff] %vm307, %v556
      %p559 = scmp.lt.s32.totalorder %s18, 1
      %s560 = scalar_select %p559, %s18, 1
      %s561 = smul.addr %s560, 2
      %s562 = smul.addr %s561, 8
      %s563 = scalar_lea.vmem %s7, %s562
      // Predicated region
      $region49: #{tpu_custom_call.1} parent=47 // pred_check
        %p564 = pneg %p188
      $region50: #{tpu_custom_call.1} parent=47 // pred_check_branch
        %566 = sbr.rel (%p564) target = $region52
      $region51: #{tpu_custom_call.1} parent=47 // pred_region
        _
      $region52: #{tpu_custom_call.1} parent=47 // pred_fallthru
        _
    $region48: #{tpu_custom_call.1} parent=5 // pred_fallthru
      _
    %p567 = scmp.le.s32.totalorder 2, %s13
    // Predicated region
    $region53: #{tpu_custom_call.1} parent=5 // pred_check
      %p568 = pneg %p567
    $region54: #{tpu_custom_call.1} parent=5 // pred_check_branch
      %570 = sbr.rel (%p568) target = $region56
    $region55: #{tpu_custom_call.1} parent=5 // pred_region
      %s571 = ssub.s32 %s13, 2
      // Predicated region
      $region57: #{tpu_custom_call.1} parent=55 // pred_check
        %p572 = pneg %p194
      $region58: #{tpu_custom_call.1} parent=55 // pred_check_branch
        %574 = sbr.rel (%p572) target = $region60
      $region59: #{tpu_custom_call.1} parent=55 // pred_region
        %p575 = scmp.lt.s32.totalorder %s19, 1
        %s576 = scalar_select %p575, %s19, 1
        %s577 = smul.addr %s576, 2
        %s578 = smul.addr %s577, 8
        %s579 = scalar_lea.vmem %s7, %s578
      $region60: #{tpu_custom_call.1} parent=55 // pred_fallthru
        _
    $region56: #{tpu_custom_call.1} parent=5 // pred_fallthru
      _
  $region6: #{tpu_custom_call.1} parent=0 // loop_footer
    %s17 = sadd.s32 1, %s13
  $region7: #{tpu_custom_call.1} parent=0 // loop_footer_branch
    %12 = sbr.rel target = $region3
  $region8: #{tpu_custom_call.1} parent=0 // loop_exit
    _

</llo_original>
